<compile_context>
chip_gen: v7x
topology: tpu7x:2x2x1
jax: 0.10.0
libtpu: 0.0.40
codegen_flags: <defaults>
</compile_context>

<pallas_src>
import functools
import math

import jax
import jax.numpy as jnp
from jax import lax
from jax.experimental import pallas as pl
from jax.experimental.pallas import tpu as pltpu


G_HIDDEN = 256
G_COMPUTE_DTYPE = jnp.bfloat16   # MXU operand dtype for g layers 2-4 (f32 accumulate)
                                 # set to jnp.float32 for strict-parity tests


# ------------------------- fused g-network Pallas kernel ---------------------

def _g_rows_kernel(x_ref, w2_ref, b2_ref, w3_ref, b3_ref, w4_ref, b4_ref,
                   o_ref, *, rows_per_group, compute_dtype):
    """One row-tile of the flattened (M, 256) layer-1 pre-activation slab.

    Applies the g network (ReLU of layer 1, then layers 2-4 as full-width
    MXU matmuls) and reduces every `rows_per_group` consecutive rows (the
    d^4 position pairs of one (batch, query, way) group) to a single row.
    """
    h = jnp.maximum(x_ref[...], 0.0)                                   # g layer 1
    b2 = b2_ref[...]
    b3 = b3_ref[...]
    b4 = b4_ref[...]
    h = jnp.maximum(
        jnp.dot(h.astype(compute_dtype), w2_ref[...],
                preferred_element_type=jnp.float32) + b2, 0.0)         # g layer 2
    h = jnp.maximum(
        jnp.dot(h.astype(compute_dtype), w3_ref[...],
                preferred_element_type=jnp.float32) + b3, 0.0)         # g layer 3
    h = jnp.maximum(
        jnp.dot(h.astype(compute_dtype), w4_ref[...],
                preferred_element_type=jnp.float32) + b4, 0.0)         # g layer 4
    tm, hdim = h.shape
    groups = tm // rows_per_group
    o_ref[0] = jnp.sum(h.reshape(groups, rows_per_group, hdim), axis=1)


def _pick_row_tile(m_rows, rows_per_group, target=256, min_tiles=2):
    """Row tile: multiple of lcm(rows_per_group, 8), divides M, <= target rows,
    and (when possible) leaves >= min_tiles grid steps for v7x megacore."""
    step = (rows_per_group * 8) // math.gcd(rows_per_group, 8)
    cands = [t for t in range(step, m_rows + 1, step) if m_rows % t == 0]
    if not cands:
        return m_rows
    le = [t for t in cands if t <= target] or [min(cands)]
    multi = [t for t in le if m_rows // t >= min_tiles]
    return max(multi) if multi else max(le)


def fused_g_network(pre1, rows_per_group, w2, b2, w3, b3, w4, b4,
                    compute_dtype=G_COMPUTE_DTYPE):
    """pre1: (M, 256) layer-1 pre-activation rows, M = b*q*n_way*d^4, grouped
    so that every `rows_per_group` consecutive rows belong to one
    (batch, query, way) group.  Returns (M // rows_per_group, 256): the sum of
    g(row) over each group's position pairs."""
    M, H = pre1.shape
    R = rows_per_group
    TM = _pick_row_tile(M, R)
    num_tiles = M // TM
    gpt = TM // R                                                       # groups per tile

    out = pl.pallas_call(
        functools.partial(_g_rows_kernel, rows_per_group=R,
                          compute_dtype=compute_dtype),
        out_shape=jax.ShapeDtypeStruct((num_tiles, gpt, H), jnp.float32),
        grid=(num_tiles,),
        in_specs=[
            pl.BlockSpec((TM, H), lambda t: (t, 0)),        # layer-1 pre-activation tile
            pl.BlockSpec((H, H), lambda t: (0, 0)),         # w2 (VMEM-resident)
            pl.BlockSpec((1, H), lambda t: (0, 0)),         # b2
            pl.BlockSpec((H, H), lambda t: (0, 0)),         # w3
            pl.BlockSpec((1, H), lambda t: (0, 0)),         # b3
            pl.BlockSpec((H, H), lambda t: (0, 0)),         # w4
            pl.BlockSpec((1, H), lambda t: (0, 0)),         # b4
        ],
        out_specs=pl.BlockSpec((1, gpt, H), lambda t: (t, 0, 0)),
        compiler_params=pltpu.CompilerParams(
            dimension_semantics=("parallel",)),
    )(pre1,
      w2.astype(compute_dtype), b2.reshape(1, H),
      w3.astype(compute_dtype), b3.reshape(1, H),
      w4.astype(compute_dtype), b4.reshape(1, H))
    return out.reshape(M // R, H)


# ------------------------------ backbone (XLA) -------------------------------

def conv3x3(x_nhwc, w_hwio, b):
    y = lax.conv_general_dilated(
        x_nhwc, w_hwio, window_strides=(1, 1), padding='VALID',
        dimension_numbers=('NHWC', 'HWIO', 'NHWC'))
    return y + b


def maxpool2(x):
    N, H, W, C = x.shape
    Ho, Wo = H // 2, W // 2
    x = x[:, :Ho * 2, :Wo * 2, :].reshape(N, Ho, 2, Wo, 2, C)
    return x.max(axis=(2, 4))


def avgpool5(x):
    N, H, W, C = x.shape
    Ho, Wo = H // 5, W // 5
    x = x[:, :Ho * 5, :Wo * 5, :].reshape(N, Ho, 5, Wo, 5, C)
    return x.mean(axis=(2, 4))


def batchnorm(x, gamma, beta, axes, eps=1e-5):
    # train-mode BatchNorm (batch statistics), as a freshly built torch module.
    mean = jnp.mean(x, axis=axes, keepdims=True)
    var = jnp.var(x, axis=axes, keepdims=True)
    return (x - mean) / jnp.sqrt(var + eps) * gamma + beta


def repnet_forward(x_nchw, p):
    x = jnp.transpose(x_nchw, (0, 2, 3, 1))                      # NCHW -> NHWC
    x = conv3x3(x, p['conv1_w'], p['conv1_b'])
    x = maxpool2(x)
    x = jax.nn.relu(batchnorm(x, p['bn1_g'], p['bn1_b'], (0, 1, 2)))
    x = conv3x3(x, p['conv2_w'], p['conv2_b'])
    x = maxpool2(x)
    x = jax.nn.relu(batchnorm(x, p['bn2_g'], p['bn2_b'], (0, 1, 2)))
    x = conv3x3(x, p['conv3_w'], p['conv3_b'])
    x = jax.nn.relu(batchnorm(x, p['bn3_g'], p['bn3_b'], (0, 1, 2)))
    x = conv3x3(x, p['conv4_w'], p['conv4_b'])
    x = jax.nn.relu(batchnorm(x, p['bn4_g'], p['bn4_b'], (0, 1, 2)))
    x = avgpool5(x)
    return jnp.transpose(x, (0, 3, 1, 2))                        # back to NCHW


# ------------------------------- full forward --------------------------------

def naivesum_forward(params, support_x, support_y, query_x, query_y,
                     n_way, k_shot):
    b, setsz, c_, h, w = support_x.shape
    q = query_x.shape[1]

    feats = repnet_forward(
        jnp.concatenate([support_x.reshape(b * setsz, c_, h, w),
                         query_x.reshape(b * q, c_, h, w)], axis=0), params)
    c, d = feats.shape[1], feats.shape[2]
    dd = d * d
    sup_f = feats[:b * setsz].reshape(b, setsz, c, d, d)
    qry_f = feats[b * setsz:].reshape(b, q, c, d, d)

    # sum support features over k_shot
    sup_f = sup_f.reshape(b, n_way, k_shot, c, d, d).sum(axis=2)
    setsz2 = n_way
    support_y = support_y[:, ::k_shot]

    # append coord channels
    coord = params['coord']                                       # (2, d, d)
    sup_f = jnp.concatenate(
        [sup_f, jnp.broadcast_to(coord[None, None], (b, setsz2, 2, d, d))], axis=2)
    qry_f = jnp.concatenate(
        [qry_f, jnp.broadcast_to(coord[None, None], (b, q, 2, d, d))], axis=2)
    cc = c + 2

    # per-position feature rows (..., dd, cc)  -- torch channel order preserved
    sup_rows = sup_f.reshape(b, setsz2, cc, dd).transpose(0, 1, 3, 2)
    qry_rows = qry_f.reshape(b, q, cc, dd).transpose(0, 1, 3, 2)

    # split g layer-1 weight: comb @ W1 = sup_rows @ W1_sup + qry_rows @ W1_qry
    # (comb row r of torch's view: [support feats at pos r%dd, query feats at pos r//dd])
    w_sup = params['g_w1'][:cc]
    w_qry = params['g_w1'][cc:]
    sup_proj = jnp.einsum('bsdc,ch->bsdh', sup_rows, w_sup)       # (b, setsz2, dd, 256)
    qry_proj = jnp.einsum('bqdc,ch->bqdh', qry_rows, w_qry) + params['g_b1']

    # layer-1 pre-activation for every (b, q, way, qry-pos, sup-pos) pair,
    # flattened to one big M axis (groups of dd*dd consecutive rows)
    pre1 = (qry_proj[:, :, None, :, None, :]
            + sup_proj[:, None, :, None, :, :])                   # (b,q,setsz2,dd,dd,H)
    pre1 = pre1.reshape(b * q * setsz2 * dd * dd, G_HIDDEN)

    # fused g network (layers 1-4 + d^4 position-pair sum) in one Pallas kernel
    x = fused_g_network(pre1, dd * dd,
                        params['g_w2'], params['g_b2'],
                        params['g_w3'], params['g_b3'],
                        params['g_w4'], params['g_b4'])           # (b*q*setsz2, 256)

    # f network (a handful of rows: plain XLA)
    x = jax.nn.relu(x @ params['f_w1'] + params['f_b1'])
    x = jax.nn.relu(x @ params['f_w2'] + params['f_b2'])
    x = x @ params['f_w3'] + params['f_b3']
    # TODO(synk): nn.Dropout(p=0.5) in train mode is stochastic; implemented as identity.
    x = jax.nn.relu(x)

    rn = x.reshape(b * q, setsz2 * 64)

    # o network (tiny: plain XLA)
    x = rn @ params['o_w1'] + params['o_b1']
    x = jax.nn.relu(batchnorm(x, params['o_bn_g'], params['o_bn_b'], (0,)))
    logits = (x @ params['o_w2'] + params['o_b2']).reshape(b, q, n_way)

    # training loss (replaces nonzero() with argmax: exactly one match per query)
    match = (support_y[:, None, :] == query_y[:, :, None])        # (b, q, setsz2)
    query_y_idx = jnp.argmax(match, axis=2)
    prob = jax.nn.sigmoid(logits)
    onehot = jax.nn.one_hot(query_y_idx, n_way, dtype=prob.dtype)
    loss = jnp.sum((prob - onehot) ** 2) / b
    return loss


# --------------------------- deterministic init ------------------------------

def compute_repnet_d(imgsz):
    s = imgsz
    s -= 2; s //= 2        # conv1 + maxpool
    s -= 2; s //= 2        # conv2 + maxpool
    s -= 2                 # conv3
    s -= 2                 # conv4
    s //= 5                # avgpool(5,5)
    return s


def init_params(key, n_way, d):
    ks = jax.random.split(key, 16)

    def dense(k, fin, fout):
        w = jax.random.normal(k, (fin, fout), jnp.float32) / jnp.sqrt(fin)
        return w, jnp.zeros((fout,), jnp.float32)

    def conv(k, cin, cout):
        w = jax.random.normal(k, (3, 3, cin, cout), jnp.float32) / jnp.sqrt(9 * cin)
        return w, jnp.zeros((cout,), jnp.float32)

    p = {}
    p['conv1_w'], p['conv1_b'] = conv(ks[0], 3, 64)
    p['conv2_w'], p['conv2_b'] = conv(ks[1], 64, 64)
    p['conv3_w'], p['conv3_b'] = conv(ks[2], 64, 64)
    p['conv4_w'], p['conv4_b'] = conv(ks[3], 64, 64)
    for i in range(1, 5):
        p[f'bn{i}_g'] = jnp.ones((64,), jnp.float32)
        p[f'bn{i}_b'] = jnp.zeros((64,), jnp.float32)
    c = 64
    p['g_w1'], p['g_b1'] = dense(ks[4], (c + 2) * 2, G_HIDDEN)
    p['g_w2'], p['g_b2'] = dense(ks[5], G_HIDDEN, G_HIDDEN)
    p['g_w3'], p['g_b3'] = dense(ks[6], G_HIDDEN, G_HIDDEN)
    p['g_w4'], p['g_b4'] = dense(ks[7], G_HIDDEN, G_HIDDEN)
    p['f_w1'], p['f_b1'] = dense(ks[8], G_HIDDEN, 128)
    p['f_w2'], p['f_b2'] = dense(ks[9], 128, 128)
    p['f_w3'], p['f_b3'] = dense(ks[10], 128, 64)
    p['o_w1'], p['o_b1'] = dense(ks[11], n_way * 64, 64)
    p['o_bn_g'] = jnp.ones((64,), jnp.float32)
    p['o_bn_b'] = jnp.zeros((64,), jnp.float32)
    p['o_w2'], p['o_b2'] = dense(ks[12], 64, n_way)
    # coord buffer: coord[0,i,j] = i/d, coord[1,i,j] = j/d (matches torch transposes)
    ii = jnp.broadcast_to(jnp.arange(d, dtype=jnp.float32)[:, None] / d, (d, d))
    jj = jnp.broadcast_to(jnp.arange(d, dtype=jnp.float32)[None, :] / d, (d, d))
    p['coord'] = jnp.stack([ii, jj], axis=0)
    return p


# ---------------------------------- main --------------------------------------

if __name__ == "__main__":
    n_way, k_shot, imgsz = 2, 2, 64
    batchsz, querysz = 2, 2
    setsz = n_way * k_shot

    d = compute_repnet_d(imgsz)
    assert d >= 1

    key = jax.random.PRNGKey(0)
    k_sup, k_qry = jax.random.split(key)
    support_x = jax.random.normal(
        k_sup, (batchsz, setsz, 3, imgsz, imgsz), jnp.float32)
    query_x = jax.random.normal(
        k_qry, (batchsz, querysz, 3, imgsz, imgsz), jnp.float32)
    support_y = jnp.array([[5, 5, 7, 7], [3, 3, 9, 9]], dtype=jnp.int32)
    query_y = jnp.array([[7, 5], [9, 3]], dtype=jnp.int32)

    params = init_params(jax.random.PRNGKey(42), n_way, d)

    fwd = jax.jit(functools.partial(naivesum_forward, n_way=n_way, k_shot=k_shot))
    loss = fwd(params, support_x, support_y, query_x, query_y)
    jax.block_until_ready(loss)
    assert bool(jnp.isfinite(loss))
    print("KERNEL_OK")
</pallas_src>

<mosaic_0001>
module attributes {stable_mosaic.version = 11 : i64} {
  func.func @_g_rows_kernel(%arg0: i32, %arg1: memref<64x256xf32, #tpu.memory_space<vmem>>, %arg2: memref<256x256xbf16, #tpu.memory_space<vmem>>, %arg3: memref<1x256xf32, #tpu.memory_space<vmem>>, %arg4: memref<256x256xbf16, #tpu.memory_space<vmem>>, %arg5: memref<1x256xf32, #tpu.memory_space<vmem>>, %arg6: memref<256x256xbf16, #tpu.memory_space<vmem>>, %arg7: memref<1x256xf32, #tpu.memory_space<vmem>>, %arg8: memref<1x4x256xf32, #tpu.memory_space<vmem>>) attributes {dimension_semantics = [#tpu.dimension_semantics<parallel>], iteration_bounds = array<i64: 2>, scalar_prefetch = 0 : i64, scratch_operands = 0 : i64, tpu.core_type = #tpu.core_type<tc>, window_params = [{transform_indices = @transform_0, window_bounds = array<i64: 64, 256>}, {pipeline_mode = #tpu.pipeline_mode<synchronous>, transform_indices = @transform_1, window_bounds = array<i64: 256, 256>}, {pipeline_mode = #tpu.pipeline_mode<synchronous>, transform_indices = @transform_2, window_bounds = array<i64: 1, 256>}, {pipeline_mode = #tpu.pipeline_mode<synchronous>, transform_indices = @transform_3, window_bounds = array<i64: 256, 256>}, {pipeline_mode = #tpu.pipeline_mode<synchronous>, transform_indices = @transform_4, window_bounds = array<i64: 1, 256>}, {pipeline_mode = #tpu.pipeline_mode<synchronous>, transform_indices = @transform_5, window_bounds = array<i64: 256, 256>}, {pipeline_mode = #tpu.pipeline_mode<synchronous>, transform_indices = @transform_6, window_bounds = array<i64: 1, 256>}, {transform_indices = @transform_7, window_bounds = array<i64: 1, 4, 256>}]} {
    %c0 = arith.constant 0 : index
    %c0_0 = arith.constant 0 : index
    %0 = vector.load %arg1[%c0, %c0_0] : memref<64x256xf32, #tpu.memory_space<vmem>>, vector<64x256xf32>
    %cst = arith.constant 0.000000e+00 : f32
    %1 = vector.broadcast %cst : f32 to vector<64x256xf32>
    %2 = arith.maximumf %0, %1 : vector<64x256xf32>
    %c0_1 = arith.constant 0 : index
    %c0_2 = arith.constant 0 : index
    %3 = vector.load %arg3[%c0_1, %c0_2] : memref<1x256xf32, #tpu.memory_space<vmem>>, vector<1x256xf32>
    %c0_3 = arith.constant 0 : index
    %c0_4 = arith.constant 0 : index
    %4 = vector.load %arg5[%c0_3, %c0_4] : memref<1x256xf32, #tpu.memory_space<vmem>>, vector<1x256xf32>
    %c0_5 = arith.constant 0 : index
    %c0_6 = arith.constant 0 : index
    %5 = vector.load %arg7[%c0_5, %c0_6] : memref<1x256xf32, #tpu.memory_space<vmem>>, vector<1x256xf32>
    %6 = arith.truncf %2 : vector<64x256xf32> to vector<64x256xbf16>
    %c0_7 = arith.constant 0 : index
    %c0_8 = arith.constant 0 : index
    %7 = vector.load %arg2[%c0_7, %c0_8] : memref<256x256xbf16, #tpu.memory_space<vmem>>, vector<256x256xbf16>
    %cst_9 = arith.constant dense<0.000000e+00> : vector<64x256xf32>
    %8 = tpu.matmul %6, %7, %cst_9 {dimension_numbers = #tpu.dot_dimension_numbers<[1], [0], [0], [1], [0, 0, 1, 1], [], []>} : vector<64x256xbf16>, vector<256x256xbf16>, vector<64x256xf32> -> vector<64x256xf32>
    %9 = vector.broadcast %3 : vector<1x256xf32> to vector<64x256xf32>
    %10 = arith.addf %8, %9 : vector<64x256xf32>
    %cst_10 = arith.constant 0.000000e+00 : f32
    %11 = vector.broadcast %cst_10 : f32 to vector<64x256xf32>
    %12 = arith.maximumf %10, %11 : vector<64x256xf32>
    %13 = arith.truncf %12 : vector<64x256xf32> to vector<64x256xbf16>
    %c0_11 = arith.constant 0 : index
    %c0_12 = arith.constant 0 : index
    %14 = vector.load %arg4[%c0_11, %c0_12] : memref<256x256xbf16, #tpu.memory_space<vmem>>, vector<256x256xbf16>
    %cst_13 = arith.constant dense<0.000000e+00> : vector<64x256xf32>
    %15 = tpu.matmul %13, %14, %cst_13 {dimension_numbers = #tpu.dot_dimension_numbers<[1], [0], [0], [1], [0, 0, 1, 1], [], []>} : vector<64x256xbf16>, vector<256x256xbf16>, vector<64x256xf32> -> vector<64x256xf32>
    %16 = vector.broadcast %4 : vector<1x256xf32> to vector<64x256xf32>
    %17 = arith.addf %15, %16 : vector<64x256xf32>
    %cst_14 = arith.constant 0.000000e+00 : f32
    %18 = vector.broadcast %cst_14 : f32 to vector<64x256xf32>
    %19 = arith.maximumf %17, %18 : vector<64x256xf32>
    %20 = arith.truncf %19 : vector<64x256xf32> to vector<64x256xbf16>
    %c0_15 = arith.constant 0 : index
    %c0_16 = arith.constant 0 : index
    %21 = vector.load %arg6[%c0_15, %c0_16] : memref<256x256xbf16, #tpu.memory_space<vmem>>, vector<256x256xbf16>
    %cst_17 = arith.constant dense<0.000000e+00> : vector<64x256xf32>
    %22 = tpu.matmul %20, %21, %cst_17 {dimension_numbers = #tpu.dot_dimension_numbers<[1], [0], [0], [1], [0, 0, 1, 1], [], []>} : vector<64x256xbf16>, vector<256x256xbf16>, vector<64x256xf32> -> vector<64x256xf32>
    %23 = vector.broadcast %5 : vector<1x256xf32> to vector<64x256xf32>
    %24 = arith.addf %22, %23 : vector<64x256xf32>
    %cst_18 = arith.constant 0.000000e+00 : f32
    %25 = vector.broadcast %cst_18 : f32 to vector<64x256xf32>
    %26 = arith.maximumf %24, %25 : vector<64x256xf32>
    %27 = vector.shape_cast %26 : vector<64x256xf32> to vector<4x16x256xf32>
    %cst_19 = arith.constant dense<0.000000e+00> : vector<4x256xf32>
    %28 = vector.multi_reduction <add>, %27, %cst_19 [1] : vector<4x16x256xf32> to vector<4x256xf32>
    %c0_20 = arith.constant 0 : index
    %c0_21 = arith.constant 0 : index
    %c0_22 = arith.constant 0 : index
    %29 = vector.load %arg8[%c0_20, %c0_21, %c0_22] : memref<1x4x256xf32, #tpu.memory_space<vmem>>, vector<1x4x256xf32>
    %30 = vector.shape_cast %29 : vector<1x4x256xf32> to vector<4x256xf32>
    %31 = vector.shape_cast %28 : vector<4x256xf32> to vector<1x4x256xf32>
    tpu.vector_store %arg8[%c0_20, %c0_21, %c0_22], %31 {strides = array<i32>} : memref<1x4x256xf32, #tpu.memory_space<vmem>>, vector<1x4x256xf32>,
    return
  }
  func.func @transform_0(%arg0: i32) -> (i32, i32) {
    %c0_i32 = arith.constant 0 : i32
    %c0_i32_0 = arith.constant 0 : i32
    return %arg0, %c0_i32 : i32, i32
  }
  func.func @transform_1(%arg0: i32) -> (i32, i32) {
    %c0_i32 = arith.constant 0 : i32
    %c0_i32_0 = arith.constant 0 : i32
    %c0_i32_1 = arith.constant 0 : i32
    return %c0_i32, %c0_i32_0 : i32, i32
  }
  func.func @transform_2(%arg0: i32) -> (i32, i32) {
    %c0_i32 = arith.constant 0 : i32
    %c0_i32_0 = arith.constant 0 : i32
    %c0_i32_1 = arith.constant 0 : i32
    return %c0_i32, %c0_i32_0 : i32, i32
  }
  func.func @transform_3(%arg0: i32) -> (i32, i32) {
    %c0_i32 = arith.constant 0 : i32
    %c0_i32_0 = arith.constant 0 : i32
    %c0_i32_1 = arith.constant 0 : i32
    return %c0_i32, %c0_i32_0 : i32, i32
  }
  func.func @transform_4(%arg0: i32) -> (i32, i32) {
    %c0_i32 = arith.constant 0 : i32
    %c0_i32_0 = arith.constant 0 : i32
    %c0_i32_1 = arith.constant 0 : i32
    return %c0_i32, %c0_i32_0 : i32, i32
  }
  func.func @transform_5(%arg0: i32) -> (i32, i32) {
    %c0_i32 = arith.constant 0 : i32
    %c0_i32_0 = arith.constant 0 : i32
    %c0_i32_1 = arith.constant 0 : i32
    return %c0_i32, %c0_i32_0 : i32, i32
  }
  func.func @transform_6(%arg0: i32) -> (i32, i32) {
    %c0_i32 = arith.constant 0 : i32
    %c0_i32_0 = arith.constant 0 : i32
    %c0_i32_1 = arith.constant 0 : i32
    return %c0_i32, %c0_i32_0 : i32, i32
  }
  func.func @transform_7(%arg0: i32) -> (i32, i32, i32) {
    %c0_i32 = arith.constant 0 : i32
    %c0_i32_0 = arith.constant 0 : i32
    %c0_i32_1 = arith.constant 0 : i32
    return %arg0, %c0_i32, %c0_i32_0 : i32, i32, i32
  }
}

</mosaic_0001>

<llo_original>
// kernel: naivesum_forward.1
$region0: #{naivesum_forward.1}
  #allocation0 [shape = 'u32[]', space=smem, size = 0x4, offset = 0x4, fixed_abs, tag = 'smem constant byte address 0x4 - core index']
  #allocation1 [shape = 'u32[144,128]{1,0:T(1,128)}', space=vmem, size = 0x12000, scoped, tag = 'internal scratch']
  %s0 = inlined_call_operand.vmem [shape: f32[128,256], index: 0, kind: input, shape index: {}]
  %s1 = inlined_call_operand.vmem [shape: bf16[256,256], index: 1, kind: input, shape index: {}]
  %s2 = inlined_call_operand.vmem [shape: f32[1,256], index: 2, kind: input, shape index: {}]
  %s3 = inlined_call_operand.vmem [shape: bf16[256,256], index: 3, kind: input, shape index: {}]
  %s4 = inlined_call_operand.vmem [shape: f32[1,256], index: 4, kind: input, shape index: {}]
  %s5 = inlined_call_operand.vmem [shape: bf16[256,256], index: 5, kind: input, shape index: {}]
  %s6 = inlined_call_operand.vmem [shape: f32[1,256], index: 6, kind: input, shape index: {}]
  %s7 = inlined_call_operand.vmem [shape: f32[2,4,256], index: 7, kind: output, shape index: {}]
  %s8 = sld [smem:[#allocation0]]
  $region61: #{naivesum_forward.1} parent=0
    _
  %s10 = ssub.s32 1, %s8
  %s11 = scalar_select 0, %s10, %s8
  loop: start=0, step=1, limit=4
  $region2: #{naivesum_forward.1} parent=0 // loop_pre_header
    _
  $region3: #{naivesum_forward.1} parent=0 // loop_header
    %s13 = sphi 0, %s17
    %p14 = scmp.ge.s32.totalorder %s13, 4
    %s23 = sphi 0, %s25
    %s26 = sphi 0, %s23
    %s27 = sphi 0, %s26
    %s43 = sphi 0, %s27
    %s47 = sphi 0, %s47
    %s49 = sphi 0, %s47
    %s50 = sphi 0, %s49
    %s64 = sphi 0, %s50
    %s68 = sphi 0, %s68
    %s70 = sphi 0, %s68
    %s71 = sphi 0, %s70
    %s85 = sphi 0, %s71
    %s89 = sphi 0, %s89
    %s91 = sphi 0, %s89
    %s92 = sphi 0, %s91
    %s106 = sphi 0, %s92
    %s110 = sphi 0, %s110
    %s112 = sphi 0, %s110
    %s113 = sphi 0, %s112
    %s127 = sphi 0, %s113
    %s131 = sphi 0, %s131
    %s133 = sphi 0, %s131
    %s134 = sphi 0, %s133
    %s148 = sphi 0, %s134
    %s152 = sphi 0, %s152
    %s154 = sphi 0, %s152
    %s155 = sphi 0, %s154
    %s169 = sphi 0, %s155
    %s175 = sphi 0, %s177
    %s178 = sphi 0, %s175
    %s179 = sphi 0, %s178
    %s195 = sphi 0, %s179
  $region4: #{naivesum_forward.1} parent=0 // loop_header_branch
    %16 = sbr.rel (%p14) target = $region8
  $region5: #{naivesum_forward.1} parent=0 // loop_body
    %s18 = ssub.s32 %s13, 1
    %s19 = ssub.s32 %s13, 2
    %s20 = sadd.s32 %s13, 1
    %s21 = ssub.s32 %s13, %s20
    %p22 = scmp.eq.s32.totalorder %s21, 0
    %s24 = sadd.s32 %s23, 1
    %s25 = scalar_select %p22, %s23, %s24
    %p28 = pneg %p22
    %p29 = scmp.eq.s32.totalorder %s13, 1
    %p30 = por %p28, %p29
    %p31 = scmp.ne.s32.totalorder %s23, %s26
    %p32 = scmp.eq.s32.totalorder %s13, 0
    %p33 = por %p31, %p32
    %p34 = scmp.ne.s32.totalorder %s23, %s26
    %p35 = scmp.eq.s32.totalorder %s18, 1
    %p36 = por %p34, %p35
    %p37 = scmp.ne.s32.totalorder %s26, %s27
    %p38 = scmp.eq.s32.totalorder %s18, 0
    %p39 = por %p37, %p38
    %p40 = scmp.ne.s32.totalorder %s26, %s27
    %p41 = scmp.eq.s32.totalorder %s19, 1
    %p42 = por %p40, %p41
    %p44 = scmp.ne.s32.totalorder %s27, %s43
    %p45 = scmp.eq.s32.totalorder %s19, 0
    %p46 = por %p44, %p45
    %s48 = sadd.s32 %s47, 1
    %p51 = scmp.eq.s32.totalorder %s13, 1
    %p52 = scmp.ne.s32.totalorder %s47, %s49
    %p53 = scmp.eq.s32.totalorder %s13, 0
    %p54 = por %p52, %p53
    %p55 = scmp.ne.s32.totalorder %s47, %s49
    %p56 = scmp.eq.s32.totalorder %s18, 1
    %p57 = por %p55, %p56
    %p58 = scmp.ne.s32.totalorder %s49, %s50
    %p59 = scmp.eq.s32.totalorder %s18, 0
    %p60 = por %p58, %p59
    %p61 = scmp.ne.s32.totalorder %s49, %s50
    %p62 = scmp.eq.s32.totalorder %s19, 1
    %p63 = por %p61, %p62
    %p65 = scmp.ne.s32.totalorder %s50, %s64
    %p66 = scmp.eq.s32.totalorder %s19, 0
    %p67 = por %p65, %p66
    %s69 = sadd.s32 %s68, 1
    %p72 = scmp.eq.s32.totalorder %s13, 1
    %p73 = scmp.ne.s32.totalorder %s68, %s70
    %p74 = scmp.eq.s32.totalorder %s13, 0
    %p75 = por %p73, %p74
    %p76 = scmp.ne.s32.totalorder %s68, %s70
    %p77 = scmp.eq.s32.totalorder %s18, 1
    %p78 = por %p76, %p77
    %p79 = scmp.ne.s32.totalorder %s70, %s71
    %p80 = scmp.eq.s32.totalorder %s18, 0
    %p81 = por %p79, %p80
    %p82 = scmp.ne.s32.totalorder %s70, %s71
    %p83 = scmp.eq.s32.totalorder %s19, 1
    %p84 = por %p82, %p83
    %p86 = scmp.ne.s32.totalorder %s71, %s85
    %p87 = scmp.eq.s32.totalorder %s19, 0
    %p88 = por %p86, %p87
    %s90 = sadd.s32 %s89, 1
    %p93 = scmp.eq.s32.totalorder %s13, 1
    %p94 = scmp.ne.s32.totalorder %s89, %s91
    %p95 = scmp.eq.s32.totalorder %s13, 0
    %p96 = por %p94, %p95
    %p97 = scmp.ne.s32.totalorder %s89, %s91
    %p98 = scmp.eq.s32.totalorder %s18, 1
    %p99 = por %p97, %p98
    %p100 = scmp.ne.s32.totalorder %s91, %s92
    %p101 = scmp.eq.s32.totalorder %s18, 0
    %p102 = por %p100, %p101
    %p103 = scmp.ne.s32.totalorder %s91, %s92
    %p104 = scmp.eq.s32.totalorder %s19, 1
    %p105 = por %p103, %p104
    %p107 = scmp.ne.s32.totalorder %s92, %s106
    %p108 = scmp.eq.s32.totalorder %s19, 0
    %p109 = por %p107, %p108
    %s111 = sadd.s32 %s110, 1
    %p114 = scmp.eq.s32.totalorder %s13, 1
    %p115 = scmp.ne.s32.totalorder %s110, %s112
    %p116 = scmp.eq.s32.totalorder %s13, 0
    %p117 = por %p115, %p116
    %p118 = scmp.ne.s32.totalorder %s110, %s112
    %p119 = scmp.eq.s32.totalorder %s18, 1
    %p120 = por %p118, %p119
    %p121 = scmp.ne.s32.totalorder %s112, %s113
    %p122 = scmp.eq.s32.totalorder %s18, 0
    %p123 = por %p121, %p122
    %p124 = scmp.ne.s32.totalorder %s112, %s113
    %p125 = scmp.eq.s32.totalorder %s19, 1
    %p126 = por %p124, %p125
    %p128 = scmp.ne.s32.totalorder %s113, %s127
    %p129 = scmp.eq.s32.totalorder %s19, 0
    %p130 = por %p128, %p129
    %s132 = sadd.s32 %s131, 1
    %p135 = scmp.eq.s32.totalorder %s13, 1
    %p136 = scmp.ne.s32.totalorder %s131, %s133
    %p137 = scmp.eq.s32.totalorder %s13, 0
    %p138 = por %p136, %p137
    %p139 = scmp.ne.s32.totalorder %s131, %s133
    %p140 = scmp.eq.s32.totalorder %s18, 1
    %p141 = por %p139, %p140
    %p142 = scmp.ne.s32.totalorder %s133, %s134
    %p143 = scmp.eq.s32.totalorder %s18, 0
    %p144 = por %p142, %p143
    %p145 = scmp.ne.s32.totalorder %s133, %s134
    %p146 = scmp.eq.s32.totalorder %s19, 1
    %p147 = por %p145, %p146
    %p149 = scmp.ne.s32.totalorder %s134, %s148
    %p150 = scmp.eq.s32.totalorder %s19, 0
    %p151 = por %p149, %p150
    %s153 = sadd.s32 %s152, 1
    %p156 = scmp.eq.s32.totalorder %s13, 1
    %p157 = scmp.ne.s32.totalorder %s152, %s154
    %p158 = scmp.eq.s32.totalorder %s13, 0
    %p159 = por %p157, %p158
    %p160 = scmp.ne.s32.totalorder %s152, %s154
    %p161 = scmp.eq.s32.totalorder %s18, 1
    %p162 = por %p160, %p161
    %p163 = scmp.ne.s32.totalorder %s154, %s155
    %p164 = scmp.eq.s32.totalorder %s18, 0
    %p165 = por %p163, %p164
    %p166 = scmp.ne.s32.totalorder %s154, %s155
    %p167 = scmp.eq.s32.totalorder %s19, 1
    %p168 = por %p166, %p167
    %p170 = scmp.ne.s32.totalorder %s155, %s169
    %p171 = scmp.eq.s32.totalorder %s19, 0
    %p172 = por %p170, %p171
    %s173 = ssub.s32 %s13, %s20
    %p174 = scmp.eq.s32.totalorder %s173, 0
    %s176 = sadd.s32 %s175, 1
    %s177 = scalar_select %p174, %s175, %s176
    %p180 = pneg %p174
    %p181 = scmp.eq.s32.totalorder %s13, 1
    %p182 = por %p180, %p181
    %p183 = scmp.ne.s32.totalorder %s175, %s178
    %p184 = scmp.eq.s32.totalorder %s13, 0
    %p185 = por %p183, %p184
    %p186 = scmp.ne.s32.totalorder %s175, %s178
    %p187 = scmp.eq.s32.totalorder %s18, 1
    %p188 = por %p186, %p187
    %p189 = scmp.ne.s32.totalorder %s178, %s179
    %p190 = scmp.eq.s32.totalorder %s18, 0
    %p191 = por %p189, %p190
    %p192 = scmp.ne.s32.totalorder %s178, %s179
    %p193 = scmp.eq.s32.totalorder %s19, 1
    %p194 = por %p192, %p193
    %p196 = scmp.ne.s32.totalorder %s179, %s195
    %p197 = scmp.eq.s32.totalorder %s19, 0
    %p198 = por %p196, %p197
    %p199 = scmp.le.s32.totalorder 1, %s13
    %p200 = scmp.lt.s32.totalorder %s13, 3
    %p201 = pnand %p199, %p200
    %p202 = pneg %p201
    // Predicated region
    $region9: #{naivesum_forward.1} parent=5 // pred_check
      _
    $region10: #{naivesum_forward.1} parent=5 // pred_check_branch
      %204 = sbr.rel (%p201) target = $region12
    $region11: #{naivesum_forward.1} parent=5 // pred_region
      %s205 = ssub.s32 %s13, 1
      // Predicated region
      $region13: #{naivesum_forward.1} parent=11 // pred_check
        %p206 = pneg %p60
      $region14: #{naivesum_forward.1} parent=11 // pred_check_branch
        %208 = sbr.rel (%p206) target = $region16
      $region15: #{naivesum_forward.1} parent=11 // pred_region
        _
      $region16: #{naivesum_forward.1} parent=11 // pred_fallthru
        _
      // Predicated region
      $region17: #{naivesum_forward.1} parent=11 // pred_check
        %p209 = pneg %p81
      $region18: #{naivesum_forward.1} parent=11 // pred_check_branch
        %211 = sbr.rel (%p209) target = $region20
      $region19: #{naivesum_forward.1} parent=11 // pred_region
        _
      $region20: #{naivesum_forward.1} parent=11 // pred_fallthru
        _
      // Predicated region
      $region21: #{naivesum_forward.1} parent=11 // pred_check
        %p212 = pneg %p102
      $region22: #{naivesum_forward.1} parent=11 // pred_check_branch
        %214 = sbr.rel (%p212) target = $region24
      $region23: #{naivesum_forward.1} parent=11 // pred_region
        _
      $region24: #{naivesum_forward.1} parent=11 // pred_fallthru
        _
      // Predicated region
      $region25: #{naivesum_forward.1} parent=11 // pred_check
        %p215 = pneg %p123
      $region26: #{naivesum_forward.1} parent=11 // pred_check_branch
        %217 = sbr.rel (%p215) target = $region28
      $region27: #{naivesum_forward.1} parent=11 // pred_region
        _
      $region28: #{naivesum_forward.1} parent=11 // pred_fallthru
        _
      // Predicated region
      $region29: #{naivesum_forward.1} parent=11 // pred_check
        %p218 = pneg %p144
      $region30: #{naivesum_forward.1} parent=11 // pred_check_branch
        %220 = sbr.rel (%p218) target = $region32
      $region31: #{naivesum_forward.1} parent=11 // pred_region
        _
      $region32: #{naivesum_forward.1} parent=11 // pred_fallthru
        _
      // Predicated region
      $region33: #{naivesum_forward.1} parent=11 // pred_check
        %p221 = pneg %p165
      $region34: #{naivesum_forward.1} parent=11 // pred_check_branch
        %223 = sbr.rel (%p221) target = $region36
      $region35: #{naivesum_forward.1} parent=11 // pred_region
        _
      $region36: #{naivesum_forward.1} parent=11 // pred_fallthru
        _
    $region12: #{naivesum_forward.1} parent=5 // pred_fallthru
      _
    %p224 = scmp.lt.s32.totalorder %s13, 2
    // Predicated region
    $region37: #{naivesum_forward.1} parent=5 // pred_check
      %p225 = pneg %p224
    $region38: #{naivesum_forward.1} parent=5 // pred_check_branch
      %227 = sbr.rel (%p225) target = $region40
    $region39: #{naivesum_forward.1} parent=5 // pred_region
      // Predicated region
      $region41: #{naivesum_forward.1} parent=39 // pred_check
        %p228 = pneg %p33
      $region42: #{naivesum_forward.1} parent=39 // pred_check_branch
        %230 = sbr.rel (%p228) target = $region44
      $region43: #{naivesum_forward.1} parent=39 // pred_region
        %s231 = smul.u32 8, %s13
        %p232 = scmp.lt.s32.totalorder %s231, 15
        %s233 = scalar_select %p232, %s231, 15
        %s234 = smul.addr %s233, 2
        %s235 = smul.addr %s234, 8
        %s236 = scalar_lea.vmem %s0, %s235
        %s237 = smul.u32 8, %s13
      $region44: #{naivesum_forward.1} parent=39 // pred_fallthru
        _
    $region40: #{naivesum_forward.1} parent=5 // pred_fallthru
      _
    %p238 = scmp.le.s32.totalorder 1, %s13
    %p239 = scmp.lt.s32.totalorder %s13, 3
    %p240 = pnand %p238, %p239
    %p241 = pneg %p240
    // Predicated region
    $region45: #{naivesum_forward.1} parent=5 // pred_check
      _
    $region46: #{naivesum_forward.1} parent=5 // pred_check_branch
      %243 = sbr.rel (%p240) target = $region48
    $region47: #{naivesum_forward.1} parent=5 // pred_region
      %s244 = ssub.s32 %s13, 1
      %s245 = smul.u32 8, %s18
      %p246 = scmp.lt.s32.totalorder %s245, 15
      %s247 = scalar_select %p246, %s245, 15
      %s248 = smul.addr %s247, 2
      %s249 = smul.addr %s248, 8
      %s250 = scalar_lea.vmem %s0, %s249
      %p251 = pneg %p39
      %p252 = pneg %p36
      %p253 = pneg %p60
      %p254 = pneg %p57
      %p255 = pneg %p81
      %p256 = pneg %p78
      %p257 = pneg %p102
      %p258 = pneg %p99
      %p259 = pneg %p123
      %p260 = pneg %p120
      %p261 = pneg %p144
      %p262 = pneg %p141
      %p263 = pneg %p165
      %p264 = pneg %p162
      %p265 = pneg %p191
      %p266 = pneg %p188
      %p267 = scmp.lt.s32.totalorder %s18, 1
      %s268 = scalar_select %p267, %s18, 1
      %s269 = smul.addr %s268, 2
      %s270 = smul.addr %s269, 4
      %s271 = scalar_lea.vmem %s7, %s270
      %s272 = smul.u32 8, %s18
      %p273 = scmp.lt.s32.totalorder %s272, 15
      %s274 = scalar_select %p273, %s272, 15
      %s275 = smul.addr %s274, 2
      %s276 = smul.addr %s275, 8
      %s277 = scalar_lea.vmem %s0, %s276
      %s278 = smul.u32 8, %s18
      %p279 = scmp.lt.s32.totalorder %s18, 1
      %s280 = scalar_select %p279, %s18, 1
      %s281 = smul.addr %s280, 2
      %s282 = smul.addr %s281, 4
      %s283 = scalar_lea.vmem %s7, %s282
      %v284 = vld [vmem:[%s277] sm:$0xff]
      %v285 = vld [vmem:[%s277 + $0x8] sm:$0xff]
      %v286 = vld [vmem:[%s277 + $0x10] sm:$0xff]
      %v287 = vld [vmem:[%s277 + $0x18] sm:$0xff]
      %v288 = vld [vmem:[%s277 + $0x20] sm:$0xff]
      %v289 = vld [vmem:[%s277 + $0x28] sm:$0xff]
      %v290 = vld [vmem:[%s277 + $0x30] sm:$0xff]
      %v291 = vld [vmem:[%s277 + $0x38] sm:$0xff]
      %v292 = vld [vmem:[%s277 + $0x40] sm:$0xff]
      %v293 = vld [vmem:[%s277 + $0x48] sm:$0xff]
      %v294 = vld [vmem:[%s277 + $0x50] sm:$0xff]
      %v295 = vld [vmem:[%s277 + $0x58] sm:$0xff]
      %v296 = vld [vmem:[%s277 + $0x60] sm:$0xff]
      %v297 = vld [vmem:[%s277 + $0x68] sm:$0xff]
      %v298 = vld [vmem:[%s277 + $0x70] sm:$0xff]
      %v299 = vld [vmem:[%s277 + $0x78] sm:$0xff]
      %v300 = vmax.f32 %v284, 0.0
      %v301 = vmax.f32 %v285, 0.0
      %v302 = vmax.f32 %v286, 0.0
      %v303 = vmax.f32 %v287, 0.0
      %v304 = vmax.f32 %v288, 0.0
      %v305 = vmax.f32 %v289, 0.0
      %v306 = vmax.f32 %v290, 0.0
      %v307 = vmax.f32 %v291, 0.0
      %v308 = vmax.f32 %v292, 0.0
      %v309 = vmax.f32 %v293, 0.0
      %v310 = vmax.f32 %v294, 0.0
      %v311 = vmax.f32 %v295, 0.0
      %v312 = vmax.f32 %v296, 0.0
      %v313 = vmax.f32 %v297, 0.0
      %v314 = vmax.f32 %v298, 0.0
      %v315 = vmax.f32 %v299, 0.0
      %v316 = vld [vmem:[%s2] sm:$0x3]
      %v317 = vld [vmem:[%s4] sm:$0x3]
      %v318 = vld [vmem:[%s6] sm:$0x3]
      %v319 = vpack.c.bf16 %v302, %v300
      %v320 = vpack.c.bf16 %v303, %v301
      %v321 = vpack.c.bf16 %v306, %v304
      %v322 = vpack.c.bf16 %v307, %v305
      %v323 = vpack.c.bf16 %v310, %v308
      %v324 = vpack.c.bf16 %v311, %v309
      %v325 = vpack.c.bf16 %v314, %v312
      %v326 = vpack.c.bf16 %v315, %v313
      %v327 = vld [vmem:[%s1] sm:$0xff]
      %v328 = vld [vmem:[%s1 + $0x8] sm:$0xff]
      %v329 = vld [vmem:[%s1 + $0x10] sm:$0xff]
      %v330 = vld [vmem:[%s1 + $0x18] sm:$0xff]
      %v331 = vld [vmem:[%s1 + $0x20] sm:$0xff]
      %v332 = vld [vmem:[%s1 + $0x28] sm:$0xff]
      %v333 = vld [vmem:[%s1 + $0x30] sm:$0xff]
      %v334 = vld [vmem:[%s1 + $0x38] sm:$0xff]
      %v335 = vld [vmem:[%s1 + $0x40] sm:$0xff]
      %v336 = vld [vmem:[%s1 + $0x48] sm:$0xff]
      %v337 = vld [vmem:[%s1 + $0x50] sm:$0xff]
      %v338 = vld [vmem:[%s1 + $0x58] sm:$0xff]
      %v339 = vld [vmem:[%s1 + $0x60] sm:$0xff]
      %v340 = vld [vmem:[%s1 + $0x68] sm:$0xff]
      %v341 = vld [vmem:[%s1 + $0x70] sm:$0xff]
      %v342 = vld [vmem:[%s1 + $0x78] sm:$0xff]
      %v343 = vld [vmem:[%s1 + $0x80] sm:$0xff]
      %v344 = vld [vmem:[%s1 + $0x88] sm:$0xff]
      %v345 = vld [vmem:[%s1 + $0x90] sm:$0xff]
      %v346 = vld [vmem:[%s1 + $0x98] sm:$0xff]
      %v347 = vld [vmem:[%s1 + $0xa0] sm:$0xff]
      %v348 = vld [vmem:[%s1 + $0xa8] sm:$0xff]
      %v349 = vld [vmem:[%s1 + $0xb0] sm:$0xff]
      %v350 = vld [vmem:[%s1 + $0xb8] sm:$0xff]
      %v351 = vld [vmem:[%s1 + $0xc0] sm:$0xff]
      %v352 = vld [vmem:[%s1 + $0xc8] sm:$0xff]
      %v353 = vld [vmem:[%s1 + $0xd0] sm:$0xff]
      %v354 = vld [vmem:[%s1 + $0xd8] sm:$0xff]
      %v355 = vld [vmem:[%s1 + $0xe0] sm:$0xff]
      %v356 = vld [vmem:[%s1 + $0xe8] sm:$0xff]
      %v357 = vld [vmem:[%s1 + $0xf0] sm:$0xff]
      %v358 = vld [vmem:[%s1 + $0xf8] sm:$0xff]
      %v360 = vlaneseq
      %v361 = vshrl.u32 %v360, 7
      %v362 = vsub.s32 0, %v361
      %v363 = vrot.slane %v316, %v362
      %v364 = vlaneseq
      %v365 = vshrl.u32 %v364, 7
      %v366 = vsub.s32 1, %v365
      %v367 = vrot.slane %v316, %v366
      %v402 = vunpack.c.l.b16 %v327
      %v403 = vunpack.c.h.b16 %v327
      %v404 = vunpack.c.l.b16 %v328
      %v405 = vunpack.c.h.b16 %v328
      %v406 = vunpack.c.l.b16 %v329
      %v407 = vunpack.c.h.b16 %v329
      %v408 = vunpack.c.l.b16 %v330
      %v409 = vunpack.c.h.b16 %v330
      %v410 = vunpack.c.l.b16 %v331
      %v411 = vunpack.c.h.b16 %v331
      %v412 = vunpack.c.l.b16 %v332
      %v413 = vunpack.c.h.b16 %v332
      %v414 = vunpack.c.l.b16 %v333
      %v415 = vunpack.c.h.b16 %v333
      %v416 = vunpack.c.l.b16 %v334
      %v417 = vunpack.c.h.b16 %v334
      %v418 = vunpack.c.l.b16 %v335
      %v419 = vunpack.c.h.b16 %v335
      %v420 = vunpack.c.l.b16 %v336
      %v421 = vunpack.c.h.b16 %v336
      %v422 = vunpack.c.l.b16 %v337
      %v423 = vunpack.c.h.b16 %v337
      %v424 = vunpack.c.l.b16 %v338
      %v425 = vunpack.c.h.b16 %v338
      %v426 = vunpack.c.l.b16 %v339
      %v427 = vunpack.c.h.b16 %v339
      %v428 = vunpack.c.l.b16 %v340
      %v429 = vunpack.c.h.b16 %v340
      %v430 = vunpack.c.l.b16 %v341
      %v431 = vunpack.c.h.b16 %v341
      %v432 = vunpack.c.l.b16 %v342
      %v433 = vunpack.c.h.b16 %v342
      %v434 = vunpack.c.l.b16 %v343
      %v435 = vunpack.c.h.b16 %v343
      %v436 = vunpack.c.l.b16 %v344
      %v437 = vunpack.c.h.b16 %v344
      %v438 = vunpack.c.l.b16 %v345
      %v439 = vunpack.c.h.b16 %v345
      %v440 = vunpack.c.l.b16 %v346
      %v441 = vunpack.c.h.b16 %v346
      %v442 = vunpack.c.l.b16 %v347
      %v443 = vunpack.c.h.b16 %v347
      %v444 = vunpack.c.l.b16 %v348
      %v445 = vunpack.c.h.b16 %v348
      %v446 = vunpack.c.l.b16 %v349
      %v447 = vunpack.c.h.b16 %v349
      %v448 = vunpack.c.l.b16 %v350
      %v449 = vunpack.c.h.b16 %v350
      %v450 = vunpack.c.l.b16 %v351
      %v451 = vunpack.c.h.b16 %v351
      %v452 = vunpack.c.l.b16 %v352
      %v453 = vunpack.c.h.b16 %v352
      %v454 = vunpack.c.l.b16 %v353
      %v455 = vunpack.c.h.b16 %v353
      %v456 = vunpack.c.l.b16 %v354
      %v457 = vunpack.c.h.b16 %v354
      %v458 = vunpack.c.l.b16 %v355
      %v459 = vunpack.c.h.b16 %v355
      %v460 = vunpack.c.l.b16 %v356
      %v461 = vunpack.c.h.b16 %v356
      %v462 = vunpack.c.l.b16 %v357
      %v463 = vunpack.c.h.b16 %v357
      %v464 = vunpack.c.l.b16 %v358
      %v465 = vunpack.c.h.b16 %v358
      %v466 = vpack.c.b16 %v404, %v402
      %v467 = vpack.c.b16 %v405, %v403
      %v468 = vpack.c.b16 %v408, %v406
      %v469 = vpack.c.b16 %v409, %v407
      %v470 = vpack.c.b16 %v412, %v410
      %v471 = vpack.c.b16 %v413, %v411
      %v472 = vpack.c.b16 %v416, %v414
      %v473 = vpack.c.b16 %v417, %v415
      %v474 = vpack.c.b16 %v420, %v418
      %v475 = vpack.c.b16 %v421, %v419
      %v476 = vpack.c.b16 %v424, %v422
      %v477 = vpack.c.b16 %v425, %v423
      %v478 = vpack.c.b16 %v428, %v426
      %v479 = vpack.c.b16 %v429, %v427
      %v480 = vpack.c.b16 %v432, %v430
      %v481 = vpack.c.b16 %v433, %v431
      %v482 = vpack.c.b16 %v436, %v434
      %v483 = vpack.c.b16 %v437, %v435
      %v484 = vpack.c.b16 %v440, %v438
      %v485 = vpack.c.b16 %v441, %v439
      %v486 = vpack.c.b16 %v444, %v442
      %v487 = vpack.c.b16 %v445, %v443
      %v488 = vpack.c.b16 %v448, %v446
      %v489 = vpack.c.b16 %v449, %v447
      %v490 = vpack.c.b16 %v452, %v450
      %v491 = vpack.c.b16 %v453, %v451
      %v492 = vpack.c.b16 %v456, %v454
      %v493 = vpack.c.b16 %v457, %v455
      %v494 = vpack.c.b16 %v460, %v458
      %v495 = vpack.c.b16 %v461, %v459
      %v496 = vpack.c.b16 %v464, %v462
      %v497 = vpack.c.b16 %v465, %v463
      %530 = vmatprep.subr.bf16.mxu0 %v467
      %531 = vmatpush1.bf16.msra.mxu0 %v466
      %532 = vmatprep.subr.bf16.mxu0 %v469
      %533 = vmatpush1.bf16.msra.mxu0 %v468
      %534 = vmatprep.subr.bf16.mxu0 %v471
      %535 = vmatpush1.bf16.msra.mxu0 %v470
      %536 = vmatprep.subr.bf16.mxu0 %v473
      %537 = vmatpush1.bf16.msra.mxu0 %v472
      %538 = vmatprep.subr.bf16.mxu0 %v475
      %539 = vmatpush1.bf16.msra.mxu0 %v474
      %540 = vmatprep.subr.bf16.mxu0 %v477
      %541 = vmatpush1.bf16.msra.mxu0 %v476
      %542 = vmatprep.subr.bf16.mxu0 %v479
      %543 = vmatpush1.bf16.msra.mxu0 %v478
      %544 = vmatprep.subr.bf16.mxu0 %v481
      %545 = vmatpush1.bf16.msra.mxu0 %v480
      %546 = vmatprep.subr.bf16.mxu0 %v483
      %547 = vmatpush1.bf16.msra.mxu0 %v482
      %548 = vmatprep.subr.bf16.mxu0 %v485
      %549 = vmatpush1.bf16.msra.mxu0 %v484
      %550 = vmatprep.subr.bf16.mxu0 %v487
      %551 = vmatpush1.bf16.msra.mxu0 %v486
      %552 = vmatprep.subr.bf16.mxu0 %v489
      %553 = vmatpush1.bf16.msra.mxu0 %v488
      %554 = vmatprep.subr.bf16.mxu0 %v491
      %555 = vmatpush1.bf16.msra.mxu0 %v490
      %556 = vmatprep.subr.bf16.mxu0 %v493
      %557 = vmatpush1.bf16.msra.mxu0 %v492
      %558 = vmatprep.subr.bf16.mxu0 %v495
      %559 = vmatpush1.bf16.msra.mxu0 %v494
      %560 = vmatprep.subr.bf16.mxu0 %v497
      %561 = vmatpush1.bf16.msra.mxu0 %v496
      %562 = vmatprep.mubr.bf16.mxu0 %v320
      %563 = vmatmul.mubr.bf16.gmra.mrb[0].mxu0 %v319
      %v564 = vpop.f32.mrb[0].mxu0
      %v565 = vadd.f32 %v363, %v564
      %v566 = vpop.f32.mrb[0].mxu0
      %v567 = vadd.f32 %v367, %v566
      %v568 = vpop.f32.mrb[0].mxu0
      %v569 = vadd.f32 %v363, %v568
      %v570 = vpop.f32.mrb[0].mxu0
      %v571 = vadd.f32 %v367, %v570
      %572 = vmatprep.mubr.bf16.mxu0 %v322
      %573 = vmatmul.mubr.bf16.gmra.mrb[0].mxu0 %v321
      %v574 = vpop.f32.mrb[0].mxu0
      %v575 = vadd.f32 %v363, %v574
      %v576 = vpop.f32.mrb[0].mxu0
      %v577 = vadd.f32 %v367, %v576
      %v578 = vpop.f32.mrb[0].mxu0
      %v579 = vadd.f32 %v363, %v578
      %v580 = vpop.f32.mrb[0].mxu0
      %v581 = vadd.f32 %v367, %v580
      %582 = vmatprep.mubr.bf16.mxu0 %v324
      %583 = vmatmul.mubr.bf16.gmra.mrb[0].mxu0 %v323
      %v584 = vpop.f32.mrb[0].mxu0
      %v585 = vadd.f32 %v363, %v584
      %v586 = vpop.f32.mrb[0].mxu0
      %v587 = vadd.f32 %v367, %v586
      %v588 = vpop.f32.mrb[0].mxu0
      %v589 = vadd.f32 %v363, %v588
      %v590 = vpop.f32.mrb[0].mxu0
      %v591 = vadd.f32 %v367, %v590
      %592 = vmatprep.mubr.bf16.mxu0 %v326
      %593 = vmatmul.mubr.bf16.gmra.mrb[0].mxu0 %v325
      %v594 = vpop.f32.mrb[0].mxu0
      %v595 = vadd.f32 %v363, %v594
      %v596 = vpop.f32.mrb[0].mxu0
      %v597 = vadd.f32 %v367, %v596
      %v598 = vpop.f32.mrb[0].mxu0
      %v599 = vadd.f32 %v363, %v598
      %v600 = vpop.f32.mrb[0].mxu0
      %v601 = vadd.f32 %v367, %v600
      %602 = vdwg.mxu0
      %v603 = vmax.f32 %v565, 0.0
      %v604 = vmax.f32 %v567, 0.0
      %v605 = vmax.f32 %v569, 0.0
      %v606 = vmax.f32 %v571, 0.0
      %v607 = vmax.f32 %v575, 0.0
      %v608 = vmax.f32 %v577, 0.0
      %v609 = vmax.f32 %v579, 0.0
      %v610 = vmax.f32 %v581, 0.0
      %v611 = vmax.f32 %v585, 0.0
      %v612 = vmax.f32 %v587, 0.0
      %v613 = vmax.f32 %v589, 0.0
      %v614 = vmax.f32 %v591, 0.0
      %v615 = vmax.f32 %v595, 0.0
      %v616 = vmax.f32 %v597, 0.0
      %v617 = vmax.f32 %v599, 0.0
      %v618 = vmax.f32 %v601, 0.0
      %v619 = vpack.c.bf16 %v605, %v603
      %v620 = vpack.c.bf16 %v606, %v604
      %v621 = vpack.c.bf16 %v609, %v607
      %v622 = vpack.c.bf16 %v610, %v608
      %v623 = vpack.c.bf16 %v613, %v611
      %v624 = vpack.c.bf16 %v614, %v612
      %v625 = vpack.c.bf16 %v617, %v615
      %v626 = vpack.c.bf16 %v618, %v616
      %v627 = vld [vmem:[%s3] sm:$0xff]
      %v628 = vld [vmem:[%s3 + $0x8] sm:$0xff]
      %v629 = vld [vmem:[%s3 + $0x10] sm:$0xff]
      %v630 = vld [vmem:[%s3 + $0x18] sm:$0xff]
      %v631 = vld [vmem:[%s3 + $0x20] sm:$0xff]
      %v632 = vld [vmem:[%s3 + $0x28] sm:$0xff]
      %v633 = vld [vmem:[%s3 + $0x30] sm:$0xff]
      %v634 = vld [vmem:[%s3 + $0x38] sm:$0xff]
      %v635 = vld [vmem:[%s3 + $0x40] sm:$0xff]
      %v636 = vld [vmem:[%s3 + $0x48] sm:$0xff]
      %v637 = vld [vmem:[%s3 + $0x50] sm:$0xff]
      %v638 = vld [vmem:[%s3 + $0x58] sm:$0xff]
      %v639 = vld [vmem:[%s3 + $0x60] sm:$0xff]
      %v640 = vld [vmem:[%s3 + $0x68] sm:$0xff]
      %v641 = vld [vmem:[%s3 + $0x70] sm:$0xff]
      %v642 = vld [vmem:[%s3 + $0x78] sm:$0xff]
      %v643 = vld [vmem:[%s3 + $0x80] sm:$0xff]
      %v644 = vld [vmem:[%s3 + $0x88] sm:$0xff]
      %v645 = vld [vmem:[%s3 + $0x90] sm:$0xff]
      %v646 = vld [vmem:[%s3 + $0x98] sm:$0xff]
      %v647 = vld [vmem:[%s3 + $0xa0] sm:$0xff]
      %v648 = vld [vmem:[%s3 + $0xa8] sm:$0xff]
      %v649 = vld [vmem:[%s3 + $0xb0] sm:$0xff]
      %v650 = vld [vmem:[%s3 + $0xb8] sm:$0xff]
      %v651 = vld [vmem:[%s3 + $0xc0] sm:$0xff]
      %v652 = vld [vmem:[%s3 + $0xc8] sm:$0xff]
      %v653 = vld [vmem:[%s3 + $0xd0] sm:$0xff]
      %v654 = vld [vmem:[%s3 + $0xd8] sm:$0xff]
      %v655 = vld [vmem:[%s3 + $0xe0] sm:$0xff]
      %v656 = vld [vmem:[%s3 + $0xe8] sm:$0xff]
      %v657 = vld [vmem:[%s3 + $0xf0] sm:$0xff]
      %v658 = vld [vmem:[%s3 + $0xf8] sm:$0xff]
      %v660 = vlaneseq
      %v661 = vshrl.u32 %v660, 7
      %v662 = vsub.s32 0, %v661
      %v663 = vrot.slane %v317, %v662
      %v664 = vlaneseq
      %v665 = vshrl.u32 %v664, 7
      %v666 = vsub.s32 1, %v665
      %v667 = vrot.slane %v317, %v666
      %v702 = vunpack.c.l.b16 %v627
      %v703 = vunpack.c.h.b16 %v627
      %v704 = vunpack.c.l.b16 %v628
      %v705 = vunpack.c.h.b16 %v628
      %v706 = vunpack.c.l.b16 %v629
      %v707 = vunpack.c.h.b16 %v629
      %v708 = vunpack.c.l.b16 %v630
      %v709 = vunpack.c.h.b16 %v630
      %v710 = vunpack.c.l.b16 %v631
      %v711 = vunpack.c.h.b16 %v631
      %v712 = vunpack.c.l.b16 %v632
      %v713 = vunpack.c.h.b16 %v632
      %v714 = vunpack.c.l.b16 %v633
      %v715 = vunpack.c.h.b16 %v633
      %v716 = vunpack.c.l.b16 %v634
      %v717 = vunpack.c.h.b16 %v634
      %v718 = vunpack.c.l.b16 %v635
      %v719 = vunpack.c.h.b16 %v635
      %v720 = vunpack.c.l.b16 %v636
      %v721 = vunpack.c.h.b16 %v636
      %v722 = vunpack.c.l.b16 %v637
      %v723 = vunpack.c.h.b16 %v637
      %v724 = vunpack.c.l.b16 %v638
      %v725 = vunpack.c.h.b16 %v638
      %v726 = vunpack.c.l.b16 %v639
      %v727 = vunpack.c.h.b16 %v639
      %v728 = vunpack.c.l.b16 %v640
      %v729 = vunpack.c.h.b16 %v640
      %v730 = vunpack.c.l.b16 %v641
      %v731 = vunpack.c.h.b16 %v641
      %v732 = vunpack.c.l.b16 %v642
      %v733 = vunpack.c.h.b16 %v642
      %v734 = vunpack.c.l.b16 %v643
      %v735 = vunpack.c.h.b16 %v643
      %v736 = vunpack.c.l.b16 %v644
      %v737 = vunpack.c.h.b16 %v644
      %v738 = vunpack.c.l.b16 %v645
      %v739 = vunpack.c.h.b16 %v645
      %v740 = vunpack.c.l.b16 %v646
      %v741 = vunpack.c.h.b16 %v646
      %v742 = vunpack.c.l.b16 %v647
      %v743 = vunpack.c.h.b16 %v647
      %v744 = vunpack.c.l.b16 %v648
      %v745 = vunpack.c.h.b16 %v648
      %v746 = vunpack.c.l.b16 %v649
      %v747 = vunpack.c.h.b16 %v649
      %v748 = vunpack.c.l.b16 %v650
      %v749 = vunpack.c.h.b16 %v650
      %v750 = vunpack.c.l.b16 %v651
      %v751 = vunpack.c.h.b16 %v651
      %v752 = vunpack.c.l.b16 %v652
      %v753 = vunpack.c.h.b16 %v652
      %v754 = vunpack.c.l.b16 %v653
      %v755 = vunpack.c.h.b16 %v653
      %v756 = vunpack.c.l.b16 %v654
      %v757 = vunpack.c.h.b16 %v654
      %v758 = vunpack.c.l.b16 %v655
      %v759 = vunpack.c.h.b16 %v655
      %v760 = vunpack.c.l.b16 %v656
      %v761 = vunpack.c.h.b16 %v656
      %v762 = vunpack.c.l.b16 %v657
      %v763 = vunpack.c.h.b16 %v657
      %v764 = vunpack.c.l.b16 %v658
      %v765 = vunpack.c.h.b16 %v658
      %v766 = vpack.c.b16 %v704, %v702
      %v767 = vpack.c.b16 %v705, %v703
      %v768 = vpack.c.b16 %v708, %v706
      %v769 = vpack.c.b16 %v709, %v707
      %v770 = vpack.c.b16 %v712, %v710
      %v771 = vpack.c.b16 %v713, %v711
      %v772 = vpack.c.b16 %v716, %v714
      %v773 = vpack.c.b16 %v717, %v715
      %v774 = vpack.c.b16 %v720, %v718
      %v775 = vpack.c.b16 %v721, %v719
      %v776 = vpack.c.b16 %v724, %v722
      %v777 = vpack.c.b16 %v725, %v723
      %v778 = vpack.c.b16 %v728, %v726
      %v779 = vpack.c.b16 %v729, %v727
      %v780 = vpack.c.b16 %v732, %v730
      %v781 = vpack.c.b16 %v733, %v731
      %v782 = vpack.c.b16 %v736, %v734
      %v783 = vpack.c.b16 %v737, %v735
      %v784 = vpack.c.b16 %v740, %v738
      %v785 = vpack.c.b16 %v741, %v739
      %v786 = vpack.c.b16 %v744, %v742
      %v787 = vpack.c.b16 %v745, %v743
      %v788 = vpack.c.b16 %v748, %v746
      %v789 = vpack.c.b16 %v749, %v747
      %v790 = vpack.c.b16 %v752, %v750
      %v791 = vpack.c.b16 %v753, %v751
      %v792 = vpack.c.b16 %v756, %v754
      %v793 = vpack.c.b16 %v757, %v755
      %v794 = vpack.c.b16 %v760, %v758
      %v795 = vpack.c.b16 %v761, %v759
      %v796 = vpack.c.b16 %v764, %v762
      %v797 = vpack.c.b16 %v765, %v763
      %830 = vmatprep.subr.bf16.mxu0 %v767
      %831 = vmatpush1.bf16.msra.mxu0 %v766
      %832 = vmatprep.subr.bf16.mxu0 %v769
      %833 = vmatpush1.bf16.msra.mxu0 %v768
      %834 = vmatprep.subr.bf16.mxu0 %v771
      %835 = vmatpush1.bf16.msra.mxu0 %v770
      %836 = vmatprep.subr.bf16.mxu0 %v773
      %837 = vmatpush1.bf16.msra.mxu0 %v772
      %838 = vmatprep.subr.bf16.mxu0 %v775
      %839 = vmatpush1.bf16.msra.mxu0 %v774
      %840 = vmatprep.subr.bf16.mxu0 %v777
      %841 = vmatpush1.bf16.msra.mxu0 %v776
      %842 = vmatprep.subr.bf16.mxu0 %v779
      %843 = vmatpush1.bf16.msra.mxu0 %v778
      %844 = vmatprep.subr.bf16.mxu0 %v781
      %845 = vmatpush1.bf16.msra.mxu0 %v780
      %846 = vmatprep.subr.bf16.mxu0 %v783
      %847 = vmatpush1.bf16.msra.mxu0 %v782
      %848 = vmatprep.subr.bf16.mxu0 %v785
      %849 = vmatpush1.bf16.msra.mxu0 %v784
      %850 = vmatprep.subr.bf16.mxu0 %v787
      %851 = vmatpush1.bf16.msra.mxu0 %v786
      %852 = vmatprep.subr.bf16.mxu0 %v789
      %853 = vmatpush1.bf16.msra.mxu0 %v788
      %854 = vmatprep.subr.bf16.mxu0 %v791
      %855 = vmatpush1.bf16.msra.mxu0 %v790
      %856 = vmatprep.subr.bf16.mxu0 %v793
      %857 = vmatpush1.bf16.msra.mxu0 %v792
      %858 = vmatprep.subr.bf16.mxu0 %v795
      %859 = vmatpush1.bf16.msra.mxu0 %v794
      %860 = vmatprep.subr.bf16.mxu0 %v797
      %861 = vmatpush1.bf16.msra.mxu0 %v796
      %862 = vmatprep.mubr.bf16.mxu0 %v620
      %863 = vmatmul.mubr.bf16.gmra.mrb[0].mxu0 %v619
      %v864 = vpop.f32.mrb[0].mxu0
      %v865 = vadd.f32 %v663, %v864
      %v866 = vpop.f32.mrb[0].mxu0
      %v867 = vadd.f32 %v667, %v866
      %v868 = vpop.f32.mrb[0].mxu0
      %v869 = vadd.f32 %v663, %v868
      %v870 = vpop.f32.mrb[0].mxu0
      %v871 = vadd.f32 %v667, %v870
      %872 = vmatprep.mubr.bf16.mxu0 %v622
      %873 = vmatmul.mubr.bf16.gmra.mrb[0].mxu0 %v621
      %v874 = vpop.f32.mrb[0].mxu0
      %v875 = vadd.f32 %v663, %v874
      %v876 = vpop.f32.mrb[0].mxu0
      %v877 = vadd.f32 %v667, %v876
      %v878 = vpop.f32.mrb[0].mxu0
      %v879 = vadd.f32 %v663, %v878
      %v880 = vpop.f32.mrb[0].mxu0
      %v881 = vadd.f32 %v667, %v880
      %882 = vmatprep.mubr.bf16.mxu0 %v624
      %883 = vmatmul.mubr.bf16.gmra.mrb[0].mxu0 %v623
      %v884 = vpop.f32.mrb[0].mxu0
      %v885 = vadd.f32 %v663, %v884
      %v886 = vpop.f32.mrb[0].mxu0
      %v887 = vadd.f32 %v667, %v886
      %v888 = vpop.f32.mrb[0].mxu0
      %v889 = vadd.f32 %v663, %v888
      %v890 = vpop.f32.mrb[0].mxu0
      %v891 = vadd.f32 %v667, %v890
      %892 = vmatprep.mubr.bf16.mxu0 %v626
      %893 = vmatmul.mubr.bf16.gmra.mrb[0].mxu0 %v625
      %v894 = vpop.f32.mrb[0].mxu0
      %v895 = vadd.f32 %v663, %v894
      %v896 = vpop.f32.mrb[0].mxu0
      %v897 = vadd.f32 %v667, %v896
      %v898 = vpop.f32.mrb[0].mxu0
      %v899 = vadd.f32 %v663, %v898
      %v900 = vpop.f32.mrb[0].mxu0
      %v901 = vadd.f32 %v667, %v900
      %902 = vdwg.mxu0
      %v903 = vmax.f32 %v865, 0.0
      %v904 = vmax.f32 %v867, 0.0
      %v905 = vmax.f32 %v869, 0.0
      %v906 = vmax.f32 %v871, 0.0
      %v907 = vmax.f32 %v875, 0.0
      %v908 = vmax.f32 %v877, 0.0
      %v909 = vmax.f32 %v879, 0.0
      %v910 = vmax.f32 %v881, 0.0
      %v911 = vmax.f32 %v885, 0.0
      %v912 = vmax.f32 %v887, 0.0
      %v913 = vmax.f32 %v889, 0.0
      %v914 = vmax.f32 %v891, 0.0
      %v915 = vmax.f32 %v895, 0.0
      %v916 = vmax.f32 %v897, 0.0
      %v917 = vmax.f32 %v899, 0.0
      %v918 = vmax.f32 %v901, 0.0
      %v919 = vpack.c.bf16 %v905, %v903
      %v920 = vpack.c.bf16 %v906, %v904
      %v921 = vpack.c.bf16 %v909, %v907
      %v922 = vpack.c.bf16 %v910, %v908
      %v923 = vpack.c.bf16 %v913, %v911
      %v924 = vpack.c.bf16 %v914, %v912
      %v925 = vpack.c.bf16 %v917, %v915
      %v926 = vpack.c.bf16 %v918, %v916
      %v927 = vld [vmem:[%s5] sm:$0xff]
      %v928 = vld [vmem:[%s5 + $0x8] sm:$0xff]
      %v929 = vld [vmem:[%s5 + $0x10] sm:$0xff]
      %v930 = vld [vmem:[%s5 + $0x18] sm:$0xff]
      %v931 = vld [vmem:[%s5 + $0x20] sm:$0xff]
      %v932 = vld [vmem:[%s5 + $0x28] sm:$0xff]
      %v933 = vld [vmem:[%s5 + $0x30] sm:$0xff]
      %v934 = vld [vmem:[%s5 + $0x38] sm:$0xff]
      %v935 = vld [vmem:[%s5 + $0x40] sm:$0xff]
      %v936 = vld [vmem:[%s5 + $0x48] sm:$0xff]
      %v937 = vld [vmem:[%s5 + $0x50] sm:$0xff]
      %v938 = vld [vmem:[%s5 + $0x58] sm:$0xff]
      %v939 = vld [vmem:[%s5 + $0x60] sm:$0xff]
      %v940 = vld [vmem:[%s5 + $0x68] sm:$0xff]
      %v941 = vld [vmem:[%s5 + $0x70] sm:$0xff]
      %v942 = vld [vmem:[%s5 + $0x78] sm:$0xff]
      %v943 = vld [vmem:[%s5 + $0x80] sm:$0xff]
      %v944 = vld [vmem:[%s5 + $0x88] sm:$0xff]
      %v945 = vld [vmem:[%s5 + $0x90] sm:$0xff]
      %v946 = vld [vmem:[%s5 + $0x98] sm:$0xff]
      %v947 = vld [vmem:[%s5 + $0xa0] sm:$0xff]
      %v948 = vld [vmem:[%s5 + $0xa8] sm:$0xff]
      %v949 = vld [vmem:[%s5 + $0xb0] sm:$0xff]
      %v950 = vld [vmem:[%s5 + $0xb8] sm:$0xff]
      %v951 = vld [vmem:[%s5 + $0xc0] sm:$0xff]
      %v952 = vld [vmem:[%s5 + $0xc8] sm:$0xff]
      %v953 = vld [vmem:[%s5 + $0xd0] sm:$0xff]
      %v954 = vld [vmem:[%s5 + $0xd8] sm:$0xff]
      %v955 = vld [vmem:[%s5 + $0xe0] sm:$0xff]
      %v956 = vld [vmem:[%s5 + $0xe8] sm:$0xff]
      %v957 = vld [vmem:[%s5 + $0xf0] sm:$0xff]
      %v958 = vld [vmem:[%s5 + $0xf8] sm:$0xff]
      %v960 = vlaneseq
      %v961 = vshrl.u32 %v960, 7
      %v962 = vsub.s32 0, %v961
      %v963 = vrot.slane %v318, %v962
      %v964 = vlaneseq
      %v965 = vshrl.u32 %v964, 7
      %v966 = vsub.s32 1, %v965
      %v967 = vrot.slane %v318, %v966
      %v1002 = vunpack.c.l.b16 %v927
      %v1003 = vunpack.c.h.b16 %v927
      %v1004 = vunpack.c.l.b16 %v928
      %v1005 = vunpack.c.h.b16 %v928
      %v1006 = vunpack.c.l.b16 %v929
      %v1007 = vunpack.c.h.b16 %v929
      %v1008 = vunpack.c.l.b16 %v930
      %v1009 = vunpack.c.h.b16 %v930
      %v1010 = vunpack.c.l.b16 %v931
      %v1011 = vunpack.c.h.b16 %v931
      %v1012 = vunpack.c.l.b16 %v932
      %v1013 = vunpack.c.h.b16 %v932
      %v1014 = vunpack.c.l.b16 %v933
      %v1015 = vunpack.c.h.b16 %v933
      %v1016 = vunpack.c.l.b16 %v934
      %v1017 = vunpack.c.h.b16 %v934
      %v1018 = vunpack.c.l.b16 %v935
      %v1019 = vunpack.c.h.b16 %v935
      %v1020 = vunpack.c.l.b16 %v936
      %v1021 = vunpack.c.h.b16 %v936
      %v1022 = vunpack.c.l.b16 %v937
      %v1023 = vunpack.c.h.b16 %v937
      %v1024 = vunpack.c.l.b16 %v938
      %v1025 = vunpack.c.h.b16 %v938
      %v1026 = vunpack.c.l.b16 %v939
      %v1027 = vunpack.c.h.b16 %v939
      %v1028 = vunpack.c.l.b16 %v940
      %v1029 = vunpack.c.h.b16 %v940
      %v1030 = vunpack.c.l.b16 %v941
      %v1031 = vunpack.c.h.b16 %v941
      %v1032 = vunpack.c.l.b16 %v942
      %v1033 = vunpack.c.h.b16 %v942
      %v1034 = vunpack.c.l.b16 %v943
      %v1035 = vunpack.c.h.b16 %v943
      %v1036 = vunpack.c.l.b16 %v944
      %v1037 = vunpack.c.h.b16 %v944
      %v1038 = vunpack.c.l.b16 %v945
      %v1039 = vunpack.c.h.b16 %v945
      %v1040 = vunpack.c.l.b16 %v946
      %v1041 = vunpack.c.h.b16 %v946
      %v1042 = vunpack.c.l.b16 %v947
      %v1043 = vunpack.c.h.b16 %v947
      %v1044 = vunpack.c.l.b16 %v948
      %v1045 = vunpack.c.h.b16 %v948
      %v1046 = vunpack.c.l.b16 %v949
      %v1047 = vunpack.c.h.b16 %v949
      %v1048 = vunpack.c.l.b16 %v950
      %v1049 = vunpack.c.h.b16 %v950
      %v1050 = vunpack.c.l.b16 %v951
      %v1051 = vunpack.c.h.b16 %v951
      %v1052 = vunpack.c.l.b16 %v952
      %v1053 = vunpack.c.h.b16 %v952
      %v1054 = vunpack.c.l.b16 %v953
      %v1055 = vunpack.c.h.b16 %v953
      %v1056 = vunpack.c.l.b16 %v954
      %v1057 = vunpack.c.h.b16 %v954
      %v1058 = vunpack.c.l.b16 %v955
      %v1059 = vunpack.c.h.b16 %v955
      %v1060 = vunpack.c.l.b16 %v956
      %v1061 = vunpack.c.h.b16 %v956
      %v1062 = vunpack.c.l.b16 %v957
      %v1063 = vunpack.c.h.b16 %v957
      %v1064 = vunpack.c.l.b16 %v958
      %v1065 = vunpack.c.h.b16 %v958
      %v1066 = vpack.c.b16 %v1004, %v1002
      %v1067 = vpack.c.b16 %v1005, %v1003
      %v1068 = vpack.c.b16 %v1008, %v1006
      %v1069 = vpack.c.b16 %v1009, %v1007
      %v1070 = vpack.c.b16 %v1012, %v1010
      %v1071 = vpack.c.b16 %v1013, %v1011
      %v1072 = vpack.c.b16 %v1016, %v1014
      %v1073 = vpack.c.b16 %v1017, %v1015
      %v1074 = vpack.c.b16 %v1020, %v1018
      %v1075 = vpack.c.b16 %v1021, %v1019
      %v1076 = vpack.c.b16 %v1024, %v1022
      %v1077 = vpack.c.b16 %v1025, %v1023
      %v1078 = vpack.c.b16 %v1028, %v1026
      %v1079 = vpack.c.b16 %v1029, %v1027
      %v1080 = vpack.c.b16 %v1032, %v1030
      %v1081 = vpack.c.b16 %v1033, %v1031
      %v1082 = vpack.c.b16 %v1036, %v1034
      %v1083 = vpack.c.b16 %v1037, %v1035
      %v1084 = vpack.c.b16 %v1040, %v1038
      %v1085 = vpack.c.b16 %v1041, %v1039
      %v1086 = vpack.c.b16 %v1044, %v1042
      %v1087 = vpack.c.b16 %v1045, %v1043
      %v1088 = vpack.c.b16 %v1048, %v1046
      %v1089 = vpack.c.b16 %v1049, %v1047
      %v1090 = vpack.c.b16 %v1052, %v1050
      %v1091 = vpack.c.b16 %v1053, %v1051
      %v1092 = vpack.c.b16 %v1056, %v1054
      %v1093 = vpack.c.b16 %v1057, %v1055
      %v1094 = vpack.c.b16 %v1060, %v1058
      %v1095 = vpack.c.b16 %v1061, %v1059
      %v1096 = vpack.c.b16 %v1064, %v1062
      %v1097 = vpack.c.b16 %v1065, %v1063
      %1130 = vmatprep.subr.bf16.mxu0 %v1067
      %1131 = vmatpush1.bf16.msra.mxu0 %v1066
      %1132 = vmatprep.subr.bf16.mxu0 %v1069
      %1133 = vmatpush1.bf16.msra.mxu0 %v1068
      %1134 = vmatprep.subr.bf16.mxu0 %v1071
      %1135 = vmatpush1.bf16.msra.mxu0 %v1070
      %1136 = vmatprep.subr.bf16.mxu0 %v1073
      %1137 = vmatpush1.bf16.msra.mxu0 %v1072
      %1138 = vmatprep.subr.bf16.mxu0 %v1075
      %1139 = vmatpush1.bf16.msra.mxu0 %v1074
      %1140 = vmatprep.subr.bf16.mxu0 %v1077
      %1141 = vmatpush1.bf16.msra.mxu0 %v1076
      %1142 = vmatprep.subr.bf16.mxu0 %v1079
      %1143 = vmatpush1.bf16.msra.mxu0 %v1078
      %1144 = vmatprep.subr.bf16.mxu0 %v1081
      %1145 = vmatpush1.bf16.msra.mxu0 %v1080
      %1146 = vmatprep.subr.bf16.mxu0 %v1083
      %1147 = vmatpush1.bf16.msra.mxu0 %v1082
      %1148 = vmatprep.subr.bf16.mxu0 %v1085
      %1149 = vmatpush1.bf16.msra.mxu0 %v1084
      %1150 = vmatprep.subr.bf16.mxu0 %v1087
      %1151 = vmatpush1.bf16.msra.mxu0 %v1086
      %1152 = vmatprep.subr.bf16.mxu0 %v1089
      %1153 = vmatpush1.bf16.msra.mxu0 %v1088
      %1154 = vmatprep.subr.bf16.mxu0 %v1091
      %1155 = vmatpush1.bf16.msra.mxu0 %v1090
      %1156 = vmatprep.subr.bf16.mxu0 %v1093
      %1157 = vmatpush1.bf16.msra.mxu0 %v1092
      %1158 = vmatprep.subr.bf16.mxu0 %v1095
      %1159 = vmatpush1.bf16.msra.mxu0 %v1094
      %1160 = vmatprep.subr.bf16.mxu0 %v1097
      %1161 = vmatpush1.bf16.msra.mxu0 %v1096
      %1162 = vmatprep.mubr.bf16.mxu0 %v920
      %1163 = vmatmul.mubr.bf16.gmra.mrb[0].mxu0 %v919
      %v1164 = vpop.f32.mrb[0].mxu0
      %v1165 = vadd.f32 %v963, %v1164
      %v1166 = vpop.f32.mrb[0].mxu0
      %v1167 = vadd.f32 %v967, %v1166
      %v1168 = vpop.f32.mrb[0].mxu0
      %v1169 = vadd.f32 %v963, %v1168
      %v1170 = vpop.f32.mrb[0].mxu0
      %v1171 = vadd.f32 %v967, %v1170
      %1172 = vmatprep.mubr.bf16.mxu0 %v922
      %1173 = vmatmul.mubr.bf16.gmra.mrb[0].mxu0 %v921
      %v1174 = vpop.f32.mrb[0].mxu0
      %v1175 = vadd.f32 %v963, %v1174
      %v1176 = vpop.f32.mrb[0].mxu0
      %v1177 = vadd.f32 %v967, %v1176
      %v1178 = vpop.f32.mrb[0].mxu0
      %v1179 = vadd.f32 %v963, %v1178
      %v1180 = vpop.f32.mrb[0].mxu0
      %v1181 = vadd.f32 %v967, %v1180
      %1182 = vmatprep.mubr.bf16.mxu0 %v924
      %1183 = vmatmul.mubr.bf16.gmra.mrb[0].mxu0 %v923
      %v1184 = vpop.f32.mrb[0].mxu0
      %v1185 = vadd.f32 %v963, %v1184
      %v1186 = vpop.f32.mrb[0].mxu0
      %v1187 = vadd.f32 %v967, %v1186
      %v1188 = vpop.f32.mrb[0].mxu0
      %v1189 = vadd.f32 %v963, %v1188
      %v1190 = vpop.f32.mrb[0].mxu0
      %v1191 = vadd.f32 %v967, %v1190
      %1192 = vmatprep.mubr.bf16.mxu0 %v926
      %1193 = vmatmul.mubr.bf16.gmra.mrb[0].mxu0 %v925
      %v1194 = vpop.f32.mrb[0].mxu0
      %v1195 = vadd.f32 %v963, %v1194
      %v1196 = vpop.f32.mrb[0].mxu0
      %v1197 = vadd.f32 %v967, %v1196
      %v1198 = vpop.f32.mrb[0].mxu0
      %v1199 = vadd.f32 %v963, %v1198
      %v1200 = vpop.f32.mrb[0].mxu0
      %v1201 = vadd.f32 %v967, %v1200
      %1202 = vdwg.mxu0
      %v1203 = vmax.f32 %v1165, 0.0
      %v1204 = vmax.f32 %v1167, 0.0
      %v1205 = vmax.f32 %v1169, 0.0
      %v1206 = vmax.f32 %v1171, 0.0
      %v1207 = vmax.f32 %v1175, 0.0
      %v1208 = vmax.f32 %v1177, 0.0
      %v1209 = vmax.f32 %v1179, 0.0
      %v1210 = vmax.f32 %v1181, 0.0
      %v1211 = vmax.f32 %v1185, 0.0
      %v1212 = vmax.f32 %v1187, 0.0
      %v1213 = vmax.f32 %v1189, 0.0
      %v1214 = vmax.f32 %v1191, 0.0
      %v1215 = vmax.f32 %v1195, 0.0
      %v1216 = vmax.f32 %v1197, 0.0
      %v1217 = vmax.f32 %v1199, 0.0
      %v1218 = vmax.f32 %v1201, 0.0
      %v1219 = vadd.f32 %v1203, %v1205
      %v1220 = vrot.slane %v1219, 4
      %v1221 = vadd.f32 %v1219, %v1220
      %v1222 = vrot.slane %v1221, 2
      %v1223 = vadd.f32 %v1221, %v1222
      %v1224 = vrot.slane %v1223, 1
      %v1225 = vadd.f32 %v1223, %v1224
      %v1226 = vadd.f32 %v1204, %v1206
      %v1227 = vrot.slane %v1226, 4
      %v1228 = vadd.f32 %v1226, %v1227
      %v1229 = vrot.slane %v1228, 2
      %v1230 = vadd.f32 %v1228, %v1229
      %v1231 = vrot.slane %v1230, 1
      %v1232 = vadd.f32 %v1230, %v1231
      %v1233 = vadd.f32 %v1207, %v1209
      %v1234 = vrot.slane %v1233, 4
      %v1235 = vadd.f32 %v1233, %v1234
      %v1236 = vrot.slane %v1235, 2
      %v1237 = vadd.f32 %v1235, %v1236
      %v1238 = vrot.slane %v1237, 1
      %v1239 = vadd.f32 %v1237, %v1238
      %v1240 = vadd.f32 %v1208, %v1210
      %v1241 = vrot.slane %v1240, 4
      %v1242 = vadd.f32 %v1240, %v1241
      %v1243 = vrot.slane %v1242, 2
      %v1244 = vadd.f32 %v1242, %v1243
      %v1245 = vrot.slane %v1244, 1
      %v1246 = vadd.f32 %v1244, %v1245
      %v1247 = vadd.f32 %v1211, %v1213
      %v1248 = vrot.slane %v1247, 4
      %v1249 = vadd.f32 %v1247, %v1248
      %v1250 = vrot.slane %v1249, 2
      %v1251 = vadd.f32 %v1249, %v1250
      %v1252 = vrot.slane %v1251, 1
      %v1253 = vadd.f32 %v1251, %v1252
      %v1254 = vadd.f32 %v1212, %v1214
      %v1255 = vrot.slane %v1254, 4
      %v1256 = vadd.f32 %v1254, %v1255
      %v1257 = vrot.slane %v1256, 2
      %v1258 = vadd.f32 %v1256, %v1257
      %v1259 = vrot.slane %v1258, 1
      %v1260 = vadd.f32 %v1258, %v1259
      %v1261 = vadd.f32 %v1215, %v1217
      %v1262 = vrot.slane %v1261, 4
      %v1263 = vadd.f32 %v1261, %v1262
      %v1264 = vrot.slane %v1263, 2
      %v1265 = vadd.f32 %v1263, %v1264
      %v1266 = vrot.slane %v1265, 1
      %v1267 = vadd.f32 %v1265, %v1266
      %v1268 = vadd.f32 %v1216, %v1218
      %v1269 = vrot.slane %v1268, 4
      %v1270 = vadd.f32 %v1268, %v1269
      %v1271 = vrot.slane %v1270, 2
      %v1272 = vadd.f32 %v1270, %v1271
      %v1273 = vrot.slane %v1272, 1
      %v1274 = vadd.f32 %v1272, %v1273
      %v1283 = vcombine.low %v1225, %v1232
      %v1284 = vcombine.low %v1239, %v1246
      %v1285 = vcombine.low %v1253, %v1260
      %v1286 = vcombine.low %v1267, %v1274
      %v1287 = vrot.slane %v1284, 7
      %vm1288 = vcmask 1041409
      %v1289 = vsel %vm1288, %v1287, %v1283
      %vm1290 = vcmask 1045509
      %v1291 = vsel %vm1290, %v1287, %v1289
      %v1292 = vrot.slane %v1285, 6
      %vm1293 = vcmask 1042434
      %v1294 = vsel %vm1293, %v1292, %v1291
      %vm1295 = vcmask 1046534
      %v1296 = vsel %vm1295, %v1292, %v1294
      %v1297 = vrot.slane %v1286, 5
      %vm1298 = vcmask 1043459
      %v1299 = vsel %vm1298, %v1297, %v1296
      %vm1300 = vcmask 1047559
      %v1301 = vsel %vm1300, %v1297, %v1299
      %1303 = vst [vmem:[%s283] sm:$0xff] %v1301
      %p1304 = scmp.lt.s32.totalorder %s18, 1
      %s1305 = scalar_select %p1304, %s18, 1
      %s1306 = smul.addr %s1305, 2
      %s1307 = smul.addr %s1306, 4
      %s1308 = scalar_lea.vmem %s7, %s1307
      // Predicated region
      $region49: #{naivesum_forward.1} parent=47 // pred_check
        %p1309 = pneg %p188
      $region50: #{naivesum_forward.1} parent=47 // pred_check_branch
        %1311 = sbr.rel (%p1309) target = $region52
      $region51: #{naivesum_forward.1} parent=47 // pred_region
        _
      $region52: #{naivesum_forward.1} parent=47 // pred_fallthru
        _
    $region48: #{naivesum_forward.1} parent=5 // pred_fallthru
      _
    %p1312 = scmp.le.s32.totalorder 2, %s13
    // Predicated region
    $region53: #{naivesum_forward.1} parent=5 // pred_check
      %p1313 = pneg %p1312
    $region54: #{naivesum_forward.1} parent=5 // pred_check_branch
      %1315 = sbr.rel (%p1313) target = $region56
    $region55: #{naivesum_forward.1} parent=5 // pred_region
      %s1316 = ssub.s32 %s13, 2
      // Predicated region
      $region57: #{naivesum_forward.1} parent=55 // pred_check
        %p1317 = pneg %p194
      $region58: #{naivesum_forward.1} parent=55 // pred_check_branch
        %1319 = sbr.rel (%p1317) target = $region60
      $region59: #{naivesum_forward.1} parent=55 // pred_region
        %p1320 = scmp.lt.s32.totalorder %s19, 1
        %s1321 = scalar_select %p1320, %s19, 1
        %s1322 = smul.addr %s1321, 2
        %s1323 = smul.addr %s1322, 4
        %s1324 = scalar_lea.vmem %s7, %s1323
      $region60: #{naivesum_forward.1} parent=55 // pred_fallthru
        _
    $region56: #{naivesum_forward.1} parent=5 // pred_fallthru
      _
  $region6: #{naivesum_forward.1} parent=0 // loop_footer
    %s17 = sadd.s32 1, %s13
  $region7: #{naivesum_forward.1} parent=0 // loop_footer_branch
    %12 = sbr.rel target = $region3
  $region8: #{naivesum_forward.1} parent=0 // loop_exit
    _

</llo_original>
